<compile_context>
chip_gen: v5e
topology: v5e:2x2
jax: 0.10.0
libtpu: 0.0.40
codegen_flags: <defaults>
</compile_context>

<pallas_src>
import jax
import jax.numpy as jnp
from jax import lax
from jax.experimental import pallas as pl
from jax.experimental.pallas import tpu as pltpu


def _round_up(x, m):
    return ((x + m - 1) // m) * m


def _pad_2d(a, shape):
    """Zero-pad a 2-D array up to `shape`; no-op (no copy) if already that shape."""
    if a.shape == shape:
        return a
    out = jnp.zeros(shape, a.dtype)
    return out.at[: a.shape[0], : a.shape[1]].set(a)


def _lr_kernel(x_ref, w_ref, b_ref, o_ref, acc_ref):
    """One (TM, TK) x-tile vs. a (N_pad, TK) weight tile; accumulate over the K grid axis."""
    k = pl.program_id(1)

    @pl.when(k == 0)
    def _():
        acc_ref[...] = jnp.zeros_like(acc_ref)

    # logits_tile += x_tile @ W_tile^T, contracting the shared K axis of the
    # *untransposed* weight — no host-side transpose, MXU handles it natively.
    acc_ref[...] += lax.dot_general(
        x_ref[...],
        w_ref[...],
        dimension_numbers=(((1,), (1,)), ((), ())),
        preferred_element_type=jnp.float32,
    )

    @pl.when(k == pl.num_programs(1) - 1)
    def _():
        # Bias add only in the finalize branch; bias is a resident (1, N_pad) block.
        o_ref[...] = (acc_ref[...] + b_ref[...]).astype(o_ref.dtype)


def _linear_pallas(x, weight, bias, *, tm_max=256, tk_max=2048):
    """x: (batch, vocab); weight: (num_labels, vocab); bias: (num_labels,) -> (batch, num_labels)."""
    batch, vocab = x.shape
    num_labels = weight.shape[0]

    # --- TPU-friendly padding / tiling -------------------------------------
    n_pad = _round_up(num_labels, 128)                 # lane-dense output / weight N axis
    tm = min(_round_up(batch, 8), tm_max)              # batch tile (parallel axis)
    m_pad = _round_up(batch, tm)
    tk = min(_round_up(vocab, 128), tk_max)            # reduction tile (arbitrary axis, last)
    k_pad = _round_up(vocab, tk)

    # Zero padding is exact for the matmul (0 * w == 0) and sliced away below.
    # Padding is skipped (no extra HBM pass) when shapes are already aligned.
    x_p = _pad_2d(x, (m_pad, k_pad))
    w_p = _pad_2d(weight, (n_pad, k_pad))
    b_p = _pad_2d(bias.reshape(1, num_labels), (1, n_pad))

    grid = (m_pad // tm, k_pad // tk)

    cost = pl.CostEstimate(
        flops=2 * m_pad * k_pad * n_pad,
        transcendentals=0,
        bytes_accessed=4 * (m_pad * k_pad + k_pad * n_pad + m_pad * n_pad),
    )

    logits_p = pl.pallas_call(
        _lr_kernel,
        out_shape=jax.ShapeDtypeStruct((m_pad, n_pad), x.dtype),
        grid_spec=pltpu.PrefetchScalarGridSpec(
            num_scalar_prefetch=0,
            grid=grid,
            in_specs=[
                pl.BlockSpec((tm, tk), lambda i, k: (i, k)),     # x tile
                pl.BlockSpec((n_pad, tk), lambda i, k: (0, k)),  # weight tile (untransposed)
                pl.BlockSpec((1, n_pad), lambda i, k: (0, 0)),   # bias, resident across grid
            ],
            out_specs=pl.BlockSpec((tm, n_pad), lambda i, k: (i, 0)),
            scratch_shapes=[pltpu.VMEM((tm, n_pad), jnp.float32)],
        ),
        compiler_params=pltpu.CompilerParams(
            dimension_semantics=("parallel", "arbitrary"),
        ),
        cost_estimate=cost,
    )(x_p, w_p, b_p)

    return logits_p[:batch, :num_labels]


def logistic_regression_forward(x, weight, bias):
    """Mirrors LogisticRegression.forward: squeeze -> dropout(identity, eval) -> Linear."""
    # torch.squeeze(): drop ALL singleton dims.
    x = jnp.squeeze(x)
    # Dropout is identity in eval/inference mode.
    # TODO(synk): training-mode dropout (mask * 1/(1-p)) could be fused in-kernel
    # with pltpu.prng_seed / pltpu.prng_random_bits if ever needed.
    squeezed_to_1d = x.ndim == 1
    if squeezed_to_1d:
        x = x[None, :]  # nn.Linear on a 1-D tensor == single example
    logits = _linear_pallas(x, weight, bias)
    if squeezed_to_1d:
        logits = logits[0]
    return logits


if __name__ == "__main__":
    # Config implied by the module: vocab_size -> num_labels linear head.
    batch = 8
    vocab_size = 512
    num_labels = 16

    key = jax.random.PRNGKey(0)
    kx, kw, kb = jax.random.split(key, 3)

    # Typical call site feeds (batch, 1, vocab_size); torch.squeeze() drops the singleton dim.
    x_raw = jax.random.normal(kx, (batch, 1, vocab_size), dtype=jnp.float32)

    # nn.Linear-style init: W (num_labels, vocab_size), b (num_labels,).
    bound = 1.0 / (vocab_size ** 0.5)
    weight = jax.random.uniform(kw, (num_labels, vocab_size), jnp.float32, -bound, bound)
    bias = jax.random.uniform(kb, (num_labels,), jnp.float32, -bound, bound)

    logits = logistic_regression_forward(x_raw, weight, bias)
    jax.block_until_ready(logits)

    # Sanity check against a plain-JAX reference.
    ref = jnp.squeeze(x_raw) @ weight.T + bias
    assert logits.shape == (batch, num_labels)
    assert jnp.allclose(logits, ref, atol=1e-5, rtol=1e-5)

    print("KERNEL_OK")
</pallas_src>

<mosaic_0001>
module attributes {stable_mosaic.version = 11 : i64} {
  func.func @_lr_kernel(%arg0: i32, %arg1: i32, %arg2: memref<8x512xf32, #tpu.memory_space<vmem>>, %arg3: memref<128x512xf32, #tpu.memory_space<vmem>>, %arg4: memref<1x128xf32, #tpu.memory_space<vmem>>, %arg5: memref<8x128xf32, #tpu.memory_space<vmem>>, %arg6: memref<8x128xf32, #tpu.memory_space<vmem>>) attributes {dimension_semantics = [#tpu.dimension_semantics<parallel>, #tpu.dimension_semantics<arbitrary>], iteration_bounds = array<i64: 1, 1>, scalar_prefetch = 0 : i64, scratch_operands = 1 : i64, tpu.core_type = #tpu.core_type<tc>, window_params = [{transform_indices = @transform_0, window_bounds = array<i64: 8, 512>}, {transform_indices = @transform_1, window_bounds = array<i64: 128, 512>}, {pipeline_mode = #tpu.pipeline_mode<synchronous>, transform_indices = @transform_2, window_bounds = array<i64: 1, 128>}, {transform_indices = @transform_3, window_bounds = array<i64: 8, 128>}]} {
    %c0_i32 = arith.constant 0 : i32
    %0 = arith.cmpi eq, %arg1, %c0_i32 : i32
    %1 = arith.extui %0 : i1 to i32
    %c0_i32_0 = arith.constant 0 : i32
    %2 = arith.cmpi ne, %1, %c0_i32_0 : i32
    scf.if %2 {
      %cst_10 = arith.constant 0.000000e+00 : f32
      %12 = vector.broadcast %cst_10 : f32 to vector<8x128xf32>
      %c0_11 = arith.constant 0 : index
      %c0_12 = arith.constant 0 : index
      %13 = vector.load %arg6[%c0_11, %c0_12] : memref<8x128xf32, #tpu.memory_space<vmem>>, vector<8x128xf32>
      tpu.vector_store %arg6[%c0_11, %c0_12], %12 {strides = array<i32>} : memref<8x128xf32, #tpu.memory_space<vmem>>, vector<8x128xf32>,
    } else {
    }
    %c0 = arith.constant 0 : index
    %c0_1 = arith.constant 0 : index
    %3 = vector.load %arg6[%c0, %c0_1] : memref<8x128xf32, #tpu.memory_space<vmem>>, vector<8x128xf32>
    %c0_2 = arith.constant 0 : index
    %c0_3 = arith.constant 0 : index
    %4 = vector.load %arg2[%c0_2, %c0_3] : memref<8x512xf32, #tpu.memory_space<vmem>>, vector<8x512xf32>
    %c0_4 = arith.constant 0 : index
    %c0_5 = arith.constant 0 : index
    %5 = vector.load %arg3[%c0_4, %c0_5] : memref<128x512xf32, #tpu.memory_space<vmem>>, vector<128x512xf32>
    %cst = arith.constant dense<0.000000e+00> : vector<8x128xf32>
    %6 = tpu.matmul %4, %5, %cst {dimension_numbers = #tpu.dot_dimension_numbers<[1], [1], [0], [0], [0, 0, 1, 0], [], []>} : vector<8x512xf32>, vector<128x512xf32>, vector<8x128xf32> -> vector<8x128xf32>
    %7 = arith.addf %3, %6 : vector<8x128xf32>
    %c0_6 = arith.constant 0 : index
    %c0_7 = arith.constant 0 : index
    %8 = vector.load %arg6[%c0_6, %c0_7] : memref<8x128xf32, #tpu.memory_space<vmem>>, vector<8x128xf32>
    tpu.vector_store %arg6[%c0_6, %c0_7], %7 {strides = array<i32>} : memref<8x128xf32, #tpu.memory_space<vmem>>, vector<8x128xf32>,
    %c0_i32_8 = arith.constant 0 : i32
    %9 = arith.cmpi eq, %arg1, %c0_i32_8 : i32
    %10 = arith.extui %9 : i1 to i32
    %c0_i32_9 = arith.constant 0 : i32
    %11 = arith.cmpi ne, %10, %c0_i32_9 : i32
    scf.if %11 {
      %c0_10 = arith.constant 0 : index
      %c0_11 = arith.constant 0 : index
      %12 = vector.load %arg6[%c0_10, %c0_11] : memref<8x128xf32, #tpu.memory_space<vmem>>, vector<8x128xf32>
      %c0_12 = arith.constant 0 : index
      %c0_13 = arith.constant 0 : index
      %13 = vector.load %arg4[%c0_12, %c0_13] : memref<1x128xf32, #tpu.memory_space<vmem>>, vector<1x128xf32>
      %14 = vector.broadcast %13 : vector<1x128xf32> to vector<8x128xf32>
      %15 = arith.addf %12, %14 : vector<8x128xf32>
      %c0_14 = arith.constant 0 : index
      %c0_15 = arith.constant 0 : index
      %16 = vector.load %arg5[%c0_14, %c0_15] : memref<8x128xf32, #tpu.memory_space<vmem>>, vector<8x128xf32>
      tpu.vector_store %arg5[%c0_14, %c0_15], %15 {strides = array<i32>} : memref<8x128xf32, #tpu.memory_space<vmem>>, vector<8x128xf32>,
    } else {
    }
    return
  }
  func.func @transform_0(%arg0: i32, %arg1: i32) -> (i32, i32) {
    %c0_i32 = arith.constant 0 : i32
    return %arg0, %arg1 : i32, i32
  }
  func.func @transform_1(%arg0: i32, %arg1: i32) -> (i32, i32) {
    %c0_i32 = arith.constant 0 : i32
    %c0_i32_0 = arith.constant 0 : i32
    return %c0_i32, %arg1 : i32, i32
  }
  func.func @transform_2(%arg0: i32, %arg1: i32) -> (i32, i32) {
    %c0_i32 = arith.constant 0 : i32
    %c0_i32_0 = arith.constant 0 : i32
    %c0_i32_1 = arith.constant 0 : i32
    return %c0_i32, %c0_i32_0 : i32, i32
  }
  func.func @transform_3(%arg0: i32, %arg1: i32) -> (i32, i32) {
    %c0_i32 = arith.constant 0 : i32
    %c0_i32_0 = arith.constant 0 : i32
    return %arg0, %c0_i32 : i32, i32
  }
}

</mosaic_0001>

<llo_original>
// kernel: tpu_custom_call.1
$region0: #{tpu_custom_call.1}
  #allocation0 [shape = 'u32[]', space=smem, size = 0x4, offset = 0x4, fixed_abs, tag = 'smem constant byte address 0x4 - core index']
  #allocation1 [shape = 'u32[72,128]{1,0:T(1,128)}', space=vmem, size = 0x9000, scoped, tag = 'internal scratch']
  #allocation2 [shape = 'f32[8,128]{1,0:T(8,128)}', space=vmem, size = 0x1000, scoped, tag = 'scratch operand']
  %s0 = inlined_call_operand.hbm [shape: f32[8,512], index: 0, kind: input, shape index: {}]
  %s1 = inlined_call_operand.hbm [shape: f32[128,512], index: 1, kind: input, shape index: {}]
  %s2 = inlined_call_operand.vmem [shape: f32[1,128], index: 2, kind: input, shape index: {}]
  %s3 = inlined_call_operand.hbm [shape: f32[8,128], index: 3, kind: output, shape index: {}]
  %s4 = sld [smem:[#allocation0]]
  $region38: #{tpu_custom_call.1} parent=0
    _
  %s6 = ssub.s32 1, %s4
  %s7 = scalar_select 0, %s6, %s4
  $region1: #{tpu_custom_call.1} parent=0
    #allocation3 [shape = 'u8[16384]{0}', space=vmem, size = 0x4000, scoped, tag = 'input window, operand 0, single buffered']
    #allocation4 [shape = 's32[1]{0}', space=sflag, size = 0x4, scoped, tag = 'scoped memory for tpu_custom_call.1']
    #allocation5 [shape = 's32[1]{0}', space=sflag, size = 0x4, scoped, tag = 'scoped memory for tpu_custom_call.1']
    #allocation6 [shape = 'u8[262144]{0}', space=vmem, size = 0x40000, scoped, tag = 'input window, operand 1, single buffered']
    #allocation7 [shape = 's32[1]{0}', space=sflag, size = 0x4, scoped, tag = 'scoped memory for tpu_custom_call.1']
    #allocation8 [shape = 'u8[4096]{0}', space=vmem, size = 0x1000, scoped, tag = 'output window, operand 0, single buffered']
    %8 = vsyncpa [#allocation4], 0
    %9 = vsyncpa [#allocation7], 0
    %10 = vsyncpa [#allocation5], 0
    // Predicated region
    $region2: #{tpu_custom_call.1} parent=1 // pred_check
      _
    $region3: #{tpu_custom_call.1} parent=1 // pred_check_branch
      %12 = sbr.rel (0) target = $region5
    $region4: #{tpu_custom_call.1} parent=1 // pred_region
      %14 = vsyncadd [#allocation4], 0
      %s16 = sshll.u32 %s0, 4
      %s17 = int_to_ptr.hbm [resolvable:$true] %s16
      %s18 = sshll.u32 [#allocation3], 4
      %s19 = int_to_ptr.vmem [resolvable:$true] %s18
      %21 = dma.hbm_to_vmem [thread:$0]  %s17, 512, %s19, [#allocation4]
    $region5: #{tpu_custom_call.1} parent=1 // pred_fallthru
      _
    // Predicated region
    $region6: #{tpu_custom_call.1} parent=1 // pred_check
      _
    $region7: #{tpu_custom_call.1} parent=1 // pred_check_branch
      %23 = sbr.rel (0) target = $region9
    $region8: #{tpu_custom_call.1} parent=1 // pred_region
      %25 = vsyncadd [#allocation7], 0
      %s26 = sshll.u32 %s1, 4
      %s27 = int_to_ptr.hbm [resolvable:$true] %s26
      %s28 = sshll.u32 [#allocation6], 4
      %s29 = int_to_ptr.vmem [resolvable:$true] %s28
      %34 = dma.hbm_to_vmem [thread:$0]  %s27, 8192, %s29, [#allocation7], 512, 512, 32
    $region9: #{tpu_custom_call.1} parent=1 // pred_fallthru
      _
    // Predicated region
    $region10: #{tpu_custom_call.1} parent=1 // pred_check
      _
    $region11: #{tpu_custom_call.1} parent=1 // pred_check_branch
      %36 = sbr.rel (0) target = $region13
    $region12: #{tpu_custom_call.1} parent=1 // pred_region
      _
    $region13: #{tpu_custom_call.1} parent=1 // pred_fallthru
      _
    // Predicated region
    $region14: #{tpu_custom_call.1} parent=1 // pred_check
      _
    $region15: #{tpu_custom_call.1} parent=1 // pred_check_branch
      %38 = sbr.rel (0) target = $region17
    $region16: #{tpu_custom_call.1} parent=1 // pred_region
      %40 = dma.done [#allocation4], 512
    $region17: #{tpu_custom_call.1} parent=1 // pred_fallthru
      _
    // Predicated region
    $region18: #{tpu_custom_call.1} parent=1 // pred_check
      _
    $region19: #{tpu_custom_call.1} parent=1 // pred_check_branch
      %42 = sbr.rel (0) target = $region21
    $region20: #{tpu_custom_call.1} parent=1 // pred_region
      %44 = dma.done [#allocation7], 8192
    $region21: #{tpu_custom_call.1} parent=1 // pred_fallthru
      _
    %p45 = scmp.eq.s32.totalorder 0, 0
    // Predicated region
    $region22: #{tpu_custom_call.1} parent=1 // pred_check
      %p46 = pneg %p45
    $region23: #{tpu_custom_call.1} parent=1 // pred_check_branch
      %48 = sbr.rel (%p46) target = $region25
    $region24: #{tpu_custom_call.1} parent=1 // pred_region
      %49 = vst [vmem:[#allocation2] sm:$0xff] 0.0
    $region25: #{tpu_custom_call.1} parent=1 // pred_fallthru
      _
    %v50 = vld [vmem:[#allocation2] sm:$0xff]
    %v51 = vld [vmem:[#allocation3] sm:$0xff]
    %v52 = vld [vmem:[#allocation3 + $0x8] sm:$0xff]
    %v53 = vld [vmem:[#allocation3 + $0x10] sm:$0xff]
    %v54 = vld [vmem:[#allocation3 + $0x18] sm:$0xff]
    %v55 = vld [vmem:[#allocation6] sm:$0xff]
    %v56 = vld [vmem:[#allocation6 + $0x8] sm:$0xff]
    %v57 = vld [vmem:[#allocation6 + $0x10] sm:$0xff]
    %v58 = vld [vmem:[#allocation6 + $0x18] sm:$0xff]
    %v59 = vld [vmem:[#allocation6 + $0x20] sm:$0xff]
    %v60 = vld [vmem:[#allocation6 + $0x28] sm:$0xff]
    %v61 = vld [vmem:[#allocation6 + $0x30] sm:$0xff]
    %v62 = vld [vmem:[#allocation6 + $0x38] sm:$0xff]
    %v63 = vld [vmem:[#allocation6 + $0x40] sm:$0xff]
    %v64 = vld [vmem:[#allocation6 + $0x48] sm:$0xff]
    %v65 = vld [vmem:[#allocation6 + $0x50] sm:$0xff]
    %v66 = vld [vmem:[#allocation6 + $0x58] sm:$0xff]
    %v67 = vld [vmem:[#allocation6 + $0x60] sm:$0xff]
    %v68 = vld [vmem:[#allocation6 + $0x68] sm:$0xff]
    %v69 = vld [vmem:[#allocation6 + $0x70] sm:$0xff]
    %v70 = vld [vmem:[#allocation6 + $0x78] sm:$0xff]
    %v71 = vld [vmem:[#allocation6 + $0x80] sm:$0xff]
    %v72 = vld [vmem:[#allocation6 + $0x88] sm:$0xff]
    %v73 = vld [vmem:[#allocation6 + $0x90] sm:$0xff]
    %v74 = vld [vmem:[#allocation6 + $0x98] sm:$0xff]
    %v75 = vld [vmem:[#allocation6 + $0xa0] sm:$0xff]
    %v76 = vld [vmem:[#allocation6 + $0xa8] sm:$0xff]
    %v77 = vld [vmem:[#allocation6 + $0xb0] sm:$0xff]
    %v78 = vld [vmem:[#allocation6 + $0xb8] sm:$0xff]
    %v79 = vld [vmem:[#allocation6 + $0xc0] sm:$0xff]
    %v80 = vld [vmem:[#allocation6 + $0xc8] sm:$0xff]
    %v81 = vld [vmem:[#allocation6 + $0xd0] sm:$0xff]
    %v82 = vld [vmem:[#allocation6 + $0xd8] sm:$0xff]
    %v83 = vld [vmem:[#allocation6 + $0xe0] sm:$0xff]
    %v84 = vld [vmem:[#allocation6 + $0xe8] sm:$0xff]
    %v85 = vld [vmem:[#allocation6 + $0xf0] sm:$0xff]
    %v86 = vld [vmem:[#allocation6 + $0xf8] sm:$0xff]
    %v87 = vld [vmem:[#allocation6 + $0x100] sm:$0xff]
    %v88 = vld [vmem:[#allocation6 + $0x108] sm:$0xff]
    %v89 = vld [vmem:[#allocation6 + $0x110] sm:$0xff]
    %v90 = vld [vmem:[#allocation6 + $0x118] sm:$0xff]
    %v91 = vld [vmem:[#allocation6 + $0x120] sm:$0xff]
    %v92 = vld [vmem:[#allocation6 + $0x128] sm:$0xff]
    %v93 = vld [vmem:[#allocation6 + $0x130] sm:$0xff]
    %v94 = vld [vmem:[#allocation6 + $0x138] sm:$0xff]
    %v95 = vld [vmem:[#allocation6 + $0x140] sm:$0xff]
    %v96 = vld [vmem:[#allocation6 + $0x148] sm:$0xff]
    %v97 = vld [vmem:[#allocation6 + $0x150] sm:$0xff]
    %v98 = vld [vmem:[#allocation6 + $0x158] sm:$0xff]
    %v99 = vld [vmem:[#allocation6 + $0x160] sm:$0xff]
    %v100 = vld [vmem:[#allocation6 + $0x168] sm:$0xff]
    %v101 = vld [vmem:[#allocation6 + $0x170] sm:$0xff]
    %v102 = vld [vmem:[#allocation6 + $0x178] sm:$0xff]
    %v103 = vld [vmem:[#allocation6 + $0x180] sm:$0xff]
    %v104 = vld [vmem:[#allocation6 + $0x188] sm:$0xff]
    %v105 = vld [vmem:[#allocation6 + $0x190] sm:$0xff]
    %v106 = vld [vmem:[#allocation6 + $0x198] sm:$0xff]
    %v107 = vld [vmem:[#allocation6 + $0x1a0] sm:$0xff]
    %v108 = vld [vmem:[#allocation6 + $0x1a8] sm:$0xff]
    %v109 = vld [vmem:[#allocation6 + $0x1b0] sm:$0xff]
    %v110 = vld [vmem:[#allocation6 + $0x1b8] sm:$0xff]
    %v111 = vld [vmem:[#allocation6 + $0x1c0] sm:$0xff]
    %v112 = vld [vmem:[#allocation6 + $0x1c8] sm:$0xff]
    %v113 = vld [vmem:[#allocation6 + $0x1d0] sm:$0xff]
    %v114 = vld [vmem:[#allocation6 + $0x1d8] sm:$0xff]
    %v115 = vld [vmem:[#allocation6 + $0x1e0] sm:$0xff]
    %v116 = vld [vmem:[#allocation6 + $0x1e8] sm:$0xff]
    %v117 = vld [vmem:[#allocation6 + $0x1f0] sm:$0xff]
    %v118 = vld [vmem:[#allocation6 + $0x1f8] sm:$0xff]
    %119 = vmatpush.xpose.msra.mxu0 %v115
    %120 = vmatpush.xpose.msra.mxu0 %v111
    %121 = vmatpush.xpose.msra.mxu0 %v107
    %122 = vmatpush.xpose.msra.mxu0 %v103
    %123 = vmatpush.xpose.msra.mxu0 %v99
    %124 = vmatpush.xpose.msra.mxu0 %v95
    %125 = vmatpush.xpose.msra.mxu0 %v91
    %126 = vmatpush.xpose.msra.mxu0 %v87
    %127 = vmatpush.xpose.msra.mxu0 %v83
    %128 = vmatpush.xpose.msra.mxu0 %v79
    %129 = vmatpush.xpose.msra.mxu0 %v75
    %130 = vmatpush.xpose.msra.mxu0 %v71
    %131 = vmatpush.xpose.msra.mxu0 %v67
    %132 = vmatpush.xpose.msra.mxu0 %v63
    %133 = vmatpush.xpose.msra.mxu0 %v59
    %134 = vmatpush.xpose.msra.mxu0 %v55
    %135 = vmatmul.f32.gmra.mxu0 %v51
    %v136 = vpop.f32.mrf.mxu0
    %v137 = vadd.f32 0.0, %v136
    %138 = vdwg.mxu0
    %139 = vmatpush.xpose.msra.mxu0 %v116
    %140 = vmatpush.xpose.msra.mxu0 %v112
    %141 = vmatpush.xpose.msra.mxu0 %v108
    %142 = vmatpush.xpose.msra.mxu0 %v104
    %143 = vmatpush.xpose.msra.mxu0 %v100
    %144 = vmatpush.xpose.msra.mxu0 %v96
    %145 = vmatpush.xpose.msra.mxu0 %v92
    %146 = vmatpush.xpose.msra.mxu0 %v88
    %147 = vmatpush.xpose.msra.mxu0 %v84
    %148 = vmatpush.xpose.msra.mxu0 %v80
    %149 = vmatpush.xpose.msra.mxu0 %v76
    %150 = vmatpush.xpose.msra.mxu0 %v72
    %151 = vmatpush.xpose.msra.mxu0 %v68
    %152 = vmatpush.xpose.msra.mxu0 %v64
    %153 = vmatpush.xpose.msra.mxu0 %v60
    %154 = vmatpush.xpose.msra.mxu0 %v56
    %155 = vmatmul.f32.gmra.mxu0 %v52
    %v156 = vpop.f32.mrf.mxu0
    %v157 = vadd.f32 %v137, %v156
    %158 = vdwg.mxu0
    %159 = vmatpush.xpose.msra.mxu0 %v117
    %160 = vmatpush.xpose.msra.mxu0 %v113
    %161 = vmatpush.xpose.msra.mxu0 %v109
    %162 = vmatpush.xpose.msra.mxu0 %v105
    %163 = vmatpush.xpose.msra.mxu0 %v101
    %164 = vmatpush.xpose.msra.mxu0 %v97
    %165 = vmatpush.xpose.msra.mxu0 %v93
    %166 = vmatpush.xpose.msra.mxu0 %v89
    %167 = vmatpush.xpose.msra.mxu0 %v85
    %168 = vmatpush.xpose.msra.mxu0 %v81
    %169 = vmatpush.xpose.msra.mxu0 %v77
    %170 = vmatpush.xpose.msra.mxu0 %v73
    %171 = vmatpush.xpose.msra.mxu0 %v69
    %172 = vmatpush.xpose.msra.mxu0 %v65
    %173 = vmatpush.xpose.msra.mxu0 %v61
    %174 = vmatpush.xpose.msra.mxu0 %v57
    %175 = vmatmul.f32.gmra.mxu0 %v53
    %v176 = vpop.f32.mrf.mxu0
    %v177 = vadd.f32 %v157, %v176
    %178 = vdwg.mxu0
    %179 = vmatpush.xpose.msra.mxu0 %v118
    %180 = vmatpush.xpose.msra.mxu0 %v114
    %181 = vmatpush.xpose.msra.mxu0 %v110
    %182 = vmatpush.xpose.msra.mxu0 %v106
    %183 = vmatpush.xpose.msra.mxu0 %v102
    %184 = vmatpush.xpose.msra.mxu0 %v98
    %185 = vmatpush.xpose.msra.mxu0 %v94
    %186 = vmatpush.xpose.msra.mxu0 %v90
    %187 = vmatpush.xpose.msra.mxu0 %v86
    %188 = vmatpush.xpose.msra.mxu0 %v82
    %189 = vmatpush.xpose.msra.mxu0 %v78
    %190 = vmatpush.xpose.msra.mxu0 %v74
    %191 = vmatpush.xpose.msra.mxu0 %v70
    %192 = vmatpush.xpose.msra.mxu0 %v66
    %193 = vmatpush.xpose.msra.mxu0 %v62
    %194 = vmatpush.xpose.msra.mxu0 %v58
    %195 = vmatmul.f32.gmra.mxu0 %v54
    %v196 = vpop.f32.mrf.mxu0
    %v197 = vadd.f32 %v177, %v196
    %198 = vdwg.mxu0
    %v199 = vadd.f32 %v50, %v197
    %200 = vst [vmem:[#allocation2] sm:$0xff] %v199
    // Predicated region
    $region26: #{tpu_custom_call.1} parent=1 // pred_check
      %p201 = pneg %p45
    $region27: #{tpu_custom_call.1} parent=1 // pred_check_branch
      %203 = sbr.rel (%p201) target = $region29
    $region28: #{tpu_custom_call.1} parent=1 // pred_region
      %v204 = vld [vmem:[#allocation2] sm:$0xff]
      %v205 = vld [vmem:[%s2] sm:$0x1]
      %v207 = vperm.slane %v205, 0
      %v209 = vadd.f32 %v204, %v207
      %210 = vst [vmem:[#allocation8] sm:$0xff] %v209
    $region29: #{tpu_custom_call.1} parent=1 // pred_fallthru
      _
    // Predicated region
    $region30: #{tpu_custom_call.1} parent=1 // pred_check
      _
    $region31: #{tpu_custom_call.1} parent=1 // pred_check_branch
      %212 = sbr.rel (0) target = $region33
    $region32: #{tpu_custom_call.1} parent=1 // pred_region
      %214 = vsyncadd [#allocation5], 0
      %s216 = sshll.u32 [#allocation8], 4
      %s217 = int_to_ptr.vmem [resolvable:$true] %s216
      %s218 = sshll.u32 %s3, 4
      %s219 = int_to_ptr.hbm [resolvable:$true] %s218
      %221 = dma.vmem_to_hbm [thread:$0]  %s217, 128, %s219, [#allocation5]
    $region33: #{tpu_custom_call.1} parent=1 // pred_fallthru
      _
    // Predicated region
    $region34: #{tpu_custom_call.1} parent=1 // pred_check
      _
    $region35: #{tpu_custom_call.1} parent=1 // pred_check_branch
      %223 = sbr.rel (0) target = $region37
    $region36: #{tpu_custom_call.1} parent=1 // pred_region
      %225 = dma.done [#allocation5], 128
    $region37: #{tpu_custom_call.1} parent=1 // pred_fallthru
      _
    %226 = vsyncpa [#allocation4], 1
    %227 = vsyncpa [#allocation7], 1
    %228 = vsyncpa [#allocation5], 1

</llo_original>
